<compile_context>
chip_gen: v6e
topology: v6e:2x2x1
jax: 0.10.0
libtpu: 0.0.40
codegen_flags: <defaults>
</compile_context>

<pallas_src>
import jax
import jax.numpy as jnp
from jax.experimental import pallas as pl
from jax.experimental.pallas import tpu as pltpu

LOG_SIG_MAX = 2.0
LOG_SIG_MIN = -20.0
_BIG = 3.0e38  # finite "no-clamp" sentinel (safer than +/-inf in VMEM)


def _round_up(x, m):
    return ((x + m - 1) // m) * m


def _make_kernel(hp, hw):
    """Fused MLP kernel for padded hidden width `hp` and padded fused-head
    width `hw`.  b_ref rows: 0=b1, 1=b2, 2=bh(mean|log_std), 3=lo, 4=hi."""

    def kernel(state_ref, w1_ref, w2_ref, wh_ref, b_ref, out_ref):
        x = state_ref[...]                                              # [TB, S]
        b = b_ref[...]                                                  # [5, BW]

        # linear1 + relu (padded hidden cols stay exactly 0)
        h = jnp.dot(x, w1_ref[...], preferred_element_type=jnp.float32)
        h = jnp.maximum(h + b[0:1, :hp], 0.0)                           # [TB, HP]

        # linear2 + relu
        h = jnp.dot(h, w2_ref[...], preferred_element_type=jnp.float32)
        h = jnp.maximum(h + b[1:2, :hp], 0.0)                           # [TB, HP]

        # fused mean|log_std head -> one lane-dense [TB, HW] slab
        y = jnp.dot(h, wh_ref[...], preferred_element_type=jnp.float32)
        y = y + b[2:3, :hw]                                             # [TB, HW]

        # per-column clamp: log_std cols get [-20, 2], mean/padding get
        # [-BIG, +BIG] (no-op) -> two broadcast min/max ops, no iota/select.
        y = jnp.minimum(jnp.maximum(y, b[3:4, :hw]), b[4:5, :hw])

        out_ref[...] = y.astype(out_ref.dtype)

    return kernel


def gaussian_policy_forward(state, fused, *, block_b=256):
    """Fused forward pass.  state: [B, state_dim] float32.
    `fused` comes from fuse_params().  Returns (mean, log_std)."""
    B, S = state.shape
    A = fused["A"]
    HP, HW = fused["HP"], fused["HW"]
    w1, w2, wh, bias = fused["w1"], fused["w2"], fused["wh"], fused["bias"]

    # Batch tile: sublane-aligned, no larger than the (padded) batch.
    TB = min(_round_up(block_b, 8), _round_up(B, 8))
    Bp = _round_up(B, TB)
    x = state if Bp == B else jnp.pad(state, ((0, Bp - B), (0, 0)))

    kernel = _make_kernel(HP, HW)

    out = pl.pallas_call(
        kernel,
        out_shape=jax.ShapeDtypeStruct((Bp, HW), jnp.float32),
        grid=(pl.cdiv(Bp, TB),),
        in_specs=[
            # state streams along the batch grid axis
            pl.BlockSpec((TB, S), lambda i: (i, 0)),
            # weights / packed bias+bounds: constant index_map -> VMEM-resident
            pl.BlockSpec(w1.shape, lambda i: (0, 0)),
            pl.BlockSpec(w2.shape, lambda i: (0, 0)),
            pl.BlockSpec(wh.shape, lambda i: (0, 0)),
            pl.BlockSpec(bias.shape, lambda i: (0, 0)),
        ],
        out_specs=pl.BlockSpec((TB, HW), lambda i: (i, 0)),
        compiler_params=pltpu.CompilerParams(
            dimension_semantics=("parallel",)),
    )(x, w1, w2, wh, bias)

    mean = out[:B, :A]
    log_std = out[:B, A:2 * A]
    return mean, log_std


def init_params(key, state_dim, hidden_dim, action_dim):
    """Xavier-uniform init (matches weights_init_ semantics), weights stored
    as [in, out] (transposed vs. PyTorch nn.Linear)."""
    def xavier(k, fan_in, fan_out):
        limit = jnp.sqrt(6.0 / (fan_in + fan_out))
        return jax.random.uniform(k, (fan_in, fan_out), jnp.float32, -limit, limit)

    k1, k2, k3, k4 = jax.random.split(key, 4)
    return {
        "w1": xavier(k1, state_dim, hidden_dim),
        "b1": jnp.zeros((1, hidden_dim), jnp.float32),
        "w2": xavier(k2, hidden_dim, hidden_dim),
        "b2": jnp.zeros((1, hidden_dim), jnp.float32),
        "wm": xavier(k3, hidden_dim, action_dim),
        "bm": jnp.zeros((1, action_dim), jnp.float32),
        "ws": xavier(k4, hidden_dim, action_dim),
        "bs": jnp.zeros((1, action_dim), jnp.float32),
    }


def fuse_params(params, hidden_dim, action_dim):
    """Host-side packing: pad hidden to 128 lanes, fuse the two output heads
    into one [HP, HW] weight, and pack biases + per-column clamp bounds into
    one [5, max(HP, HW)] buffer.  Zero padding keeps the math identical."""
    H, A = hidden_dim, action_dim
    S = params["w1"].shape[0]
    HP = _round_up(H, 128)            # padded hidden width (lane-dense)
    HW = _round_up(2 * A, 128)        # padded fused-head width (lane-dense)
    BW = max(HP, HW)

    w1 = jnp.zeros((S, HP), jnp.float32).at[:, :H].set(params["w1"])
    w2 = jnp.zeros((HP, HP), jnp.float32).at[:H, :H].set(params["w2"])
    wh = (jnp.zeros((HP, HW), jnp.float32)
          .at[:H, :A].set(params["wm"])
          .at[:H, A:2 * A].set(params["ws"]))

    bias = (jnp.zeros((5, BW), jnp.float32)
            .at[0, :H].set(params["b1"][0])
            .at[1, :H].set(params["b2"][0])
            .at[2, :A].set(params["bm"][0])
            .at[2, A:2 * A].set(params["bs"][0])
            # row 3/4: clamp lo/hi -> only log_std columns actually clamp
            .at[3, :].set(-_BIG)
            .at[4, :].set(_BIG)
            .at[3, A:2 * A].set(LOG_SIG_MIN)
            .at[4, A:2 * A].set(LOG_SIG_MAX))

    return {"w1": w1, "w2": w2, "wh": wh, "bias": bias,
            "H": H, "A": A, "HP": HP, "HW": HW}


def reference_forward(state, params):
    """Pure-JAX reference (unfused, unpadded) for the correctness check."""
    h = jnp.maximum(state @ params["w1"] + params["b1"], 0.0)
    h = jnp.maximum(h @ params["w2"] + params["b2"], 0.0)
    mean = h @ params["wm"] + params["bm"]
    log_std = jnp.clip(h @ params["ws"] + params["bs"], LOG_SIG_MIN, LOG_SIG_MAX)
    return mean, log_std


if __name__ == "__main__":
    # Small shapes implied by the module's forward: state [B, state_dim].
    B, STATE_DIM, HIDDEN_DIM, ACTION_DIM = 64, 16, 32, 8

    key = jax.random.PRNGKey(0)
    k_params, k_state = jax.random.split(key)

    params = init_params(k_params, STATE_DIM, HIDDEN_DIM, ACTION_DIM)
    fused = fuse_params(params, HIDDEN_DIM, ACTION_DIM)
    state = jax.random.normal(k_state, (B, STATE_DIM), jnp.float32)

    # block_b=32 so the batch grid actually iterates (grid=(2,)) at this size.
    mean, log_std = gaussian_policy_forward(state, fused, block_b=32)
    jax.block_until_ready((mean, log_std))

    mean_ref, log_std_ref = reference_forward(state, params)
    assert jnp.allclose(mean, mean_ref, atol=1e-5, rtol=1e-5)
    assert jnp.allclose(log_std, log_std_ref, atol=1e-5, rtol=1e-5)

    # TODO(synk): sample() (rsample / tanh-squash / log_prob) is stochastic
    # glue on top of forward(); only the deterministic forward is in-kernel.
    print("KERNEL_OK")
</pallas_src>

<mosaic_0001>
module attributes {stable_mosaic.version = 11 : i64} {
  func.func @kernel(%arg0: i32, %arg1: memref<32x16xf32, #tpu.memory_space<vmem>>, %arg2: memref<16x128xf32, #tpu.memory_space<vmem>>, %arg3: memref<128x128xf32, #tpu.memory_space<vmem>>, %arg4: memref<128x128xf32, #tpu.memory_space<vmem>>, %arg5: memref<5x128xf32, #tpu.memory_space<vmem>>, %arg6: memref<32x128xf32, #tpu.memory_space<vmem>>) attributes {dimension_semantics = [#tpu.dimension_semantics<parallel>], iteration_bounds = array<i64: 2>, scalar_prefetch = 0 : i64, scratch_operands = 0 : i64, tpu.core_type = #tpu.core_type<tc>, window_params = [{transform_indices = @transform_0, window_bounds = array<i64: 32, 16>}, {pipeline_mode = #tpu.pipeline_mode<synchronous>, transform_indices = @transform_1, window_bounds = array<i64: 16, 128>}, {pipeline_mode = #tpu.pipeline_mode<synchronous>, transform_indices = @transform_2, window_bounds = array<i64: 128, 128>}, {pipeline_mode = #tpu.pipeline_mode<synchronous>, transform_indices = @transform_3, window_bounds = array<i64: 128, 128>}, {pipeline_mode = #tpu.pipeline_mode<synchronous>, transform_indices = @transform_4, window_bounds = array<i64: 5, 128>}, {transform_indices = @transform_5, window_bounds = array<i64: 32, 128>}]} {
    %c0 = arith.constant 0 : index
    %c0_0 = arith.constant 0 : index
    %0 = vector.load %arg1[%c0, %c0_0] : memref<32x16xf32, #tpu.memory_space<vmem>>, vector<32x16xf32>
    %c0_1 = arith.constant 0 : index
    %c0_2 = arith.constant 0 : index
    %1 = vector.load %arg5[%c0_1, %c0_2] : memref<5x128xf32, #tpu.memory_space<vmem>>, vector<5x128xf32>
    %c0_3 = arith.constant 0 : index
    %c0_4 = arith.constant 0 : index
    %2 = vector.load %arg2[%c0_3, %c0_4] : memref<16x128xf32, #tpu.memory_space<vmem>>, vector<16x128xf32>
    %cst = arith.constant dense<0.000000e+00> : vector<32x128xf32>
    %3 = tpu.matmul %0, %2, %cst {dimension_numbers = #tpu.dot_dimension_numbers<[1], [0], [0], [1], [0, 0, 1, 1], [], []>} : vector<32x16xf32>, vector<16x128xf32>, vector<32x128xf32> -> vector<32x128xf32>
    %4 = vector.extract_strided_slice %1 {offsets = [0, 0], sizes = [1, 128], strides = [1, 1]} : vector<5x128xf32> to vector<1x128xf32>
    %5 = vector.broadcast %4 : vector<1x128xf32> to vector<32x128xf32>
    %6 = arith.addf %3, %5 : vector<32x128xf32>
    %cst_5 = arith.constant 0.000000e+00 : f32
    %7 = vector.broadcast %cst_5 : f32 to vector<32x128xf32>
    %8 = arith.maximumf %6, %7 : vector<32x128xf32>
    %c0_6 = arith.constant 0 : index
    %c0_7 = arith.constant 0 : index
    %9 = vector.load %arg3[%c0_6, %c0_7] : memref<128x128xf32, #tpu.memory_space<vmem>>, vector<128x128xf32>
    %cst_8 = arith.constant dense<0.000000e+00> : vector<32x128xf32>
    %10 = tpu.matmul %8, %9, %cst_8 {dimension_numbers = #tpu.dot_dimension_numbers<[1], [0], [0], [1], [0, 0, 1, 1], [], []>} : vector<32x128xf32>, vector<128x128xf32>, vector<32x128xf32> -> vector<32x128xf32>
    %11 = vector.extract_strided_slice %1 {offsets = [1, 0], sizes = [1, 128], strides = [1, 1]} : vector<5x128xf32> to vector<1x128xf32>
    %12 = vector.broadcast %11 : vector<1x128xf32> to vector<32x128xf32>
    %13 = arith.addf %10, %12 : vector<32x128xf32>
    %cst_9 = arith.constant 0.000000e+00 : f32
    %14 = vector.broadcast %cst_9 : f32 to vector<32x128xf32>
    %15 = arith.maximumf %13, %14 : vector<32x128xf32>
    %c0_10 = arith.constant 0 : index
    %c0_11 = arith.constant 0 : index
    %16 = vector.load %arg4[%c0_10, %c0_11] : memref<128x128xf32, #tpu.memory_space<vmem>>, vector<128x128xf32>
    %cst_12 = arith.constant dense<0.000000e+00> : vector<32x128xf32>
    %17 = tpu.matmul %15, %16, %cst_12 {dimension_numbers = #tpu.dot_dimension_numbers<[1], [0], [0], [1], [0, 0, 1, 1], [], []>} : vector<32x128xf32>, vector<128x128xf32>, vector<32x128xf32> -> vector<32x128xf32>
    %18 = vector.extract_strided_slice %1 {offsets = [2, 0], sizes = [1, 128], strides = [1, 1]} : vector<5x128xf32> to vector<1x128xf32>
    %19 = vector.broadcast %18 : vector<1x128xf32> to vector<32x128xf32>
    %20 = arith.addf %17, %19 : vector<32x128xf32>
    %21 = vector.extract_strided_slice %1 {offsets = [3, 0], sizes = [1, 128], strides = [1, 1]} : vector<5x128xf32> to vector<1x128xf32>
    %22 = vector.broadcast %21 : vector<1x128xf32> to vector<32x128xf32>
    %23 = arith.maximumf %20, %22 : vector<32x128xf32>
    %24 = vector.extract_strided_slice %1 {offsets = [4, 0], sizes = [1, 128], strides = [1, 1]} : vector<5x128xf32> to vector<1x128xf32>
    %25 = vector.broadcast %24 : vector<1x128xf32> to vector<32x128xf32>
    %26 = arith.minimumf %23, %25 : vector<32x128xf32>
    %c0_13 = arith.constant 0 : index
    %c0_14 = arith.constant 0 : index
    %27 = vector.load %arg6[%c0_13, %c0_14] : memref<32x128xf32, #tpu.memory_space<vmem>>, vector<32x128xf32>
    tpu.vector_store %arg6[%c0_13, %c0_14], %26 {strides = array<i32>} : memref<32x128xf32, #tpu.memory_space<vmem>>, vector<32x128xf32>,
    return
  }
  func.func @transform_0(%arg0: i32) -> (i32, i32) {
    %c0_i32 = arith.constant 0 : i32
    %c0_i32_0 = arith.constant 0 : i32
    return %arg0, %c0_i32 : i32, i32
  }
  func.func @transform_1(%arg0: i32) -> (i32, i32) {
    %c0_i32 = arith.constant 0 : i32
    %c0_i32_0 = arith.constant 0 : i32
    %c0_i32_1 = arith.constant 0 : i32
    return %c0_i32, %c0_i32_0 : i32, i32
  }
  func.func @transform_2(%arg0: i32) -> (i32, i32) {
    %c0_i32 = arith.constant 0 : i32
    %c0_i32_0 = arith.constant 0 : i32
    %c0_i32_1 = arith.constant 0 : i32
    return %c0_i32, %c0_i32_0 : i32, i32
  }
  func.func @transform_3(%arg0: i32) -> (i32, i32) {
    %c0_i32 = arith.constant 0 : i32
    %c0_i32_0 = arith.constant 0 : i32
    %c0_i32_1 = arith.constant 0 : i32
    return %c0_i32, %c0_i32_0 : i32, i32
  }
  func.func @transform_4(%arg0: i32) -> (i32, i32) {
    %c0_i32 = arith.constant 0 : i32
    %c0_i32_0 = arith.constant 0 : i32
    %c0_i32_1 = arith.constant 0 : i32
    return %c0_i32, %c0_i32_0 : i32, i32
  }
  func.func @transform_5(%arg0: i32) -> (i32, i32) {
    %c0_i32 = arith.constant 0 : i32
    %c0_i32_0 = arith.constant 0 : i32
    return %arg0, %c0_i32 : i32, i32
  }
}

</mosaic_0001>

<llo_original>
// kernel: tpu_custom_call.1
$region0: #{tpu_custom_call.1}
  #allocation0 [shape = 'u32[]', space=smem, size = 0x4, offset = 0x4, fixed_abs, tag = 'smem constant byte address 0x4 - core index']
  #allocation1 [shape = 'u32[144,128]{1,0:T(1,128)}', space=vmem, size = 0x12000, scoped, tag = 'internal scratch']
  %s0 = inlined_call_operand.vmem [shape: f32[64,16], index: 0, kind: input, shape index: {}]
  %s1 = inlined_call_operand.vmem [shape: f32[16,128], index: 1, kind: input, shape index: {}]
  %s2 = inlined_call_operand.hbm [shape: f32[128,128], index: 2, kind: input, shape index: {}]
  %s3 = inlined_call_operand.hbm [shape: f32[128,128], index: 3, kind: input, shape index: {}]
  %s4 = inlined_call_operand.vmem [shape: f32[5,128], index: 4, kind: input, shape index: {}]
  %s5 = inlined_call_operand.hbm [shape: f32[64,128], index: 5, kind: output, shape index: {}]
  %s6 = sld [smem:[#allocation0]]
  $region61: #{tpu_custom_call.1} parent=0
    _
  %s8 = ssub.s32 1, %s6
  %s9 = scalar_select 0, %s8, %s6
  $region1: #{tpu_custom_call.1} parent=0
    #allocation2 [shape = 'u8[65536]{0}', space=vmem, size = 0x10000, scoped, tag = 'input window, operand 2, single buffered']
    #allocation3 [shape = 's32[2]{0}', space=sflag, size = 0x8, scoped, tag = 'scoped memory for tpu_custom_call.1']
    #allocation4 [shape = 's32[2]{0}', space=sflag, size = 0x8, scoped, tag = 'scoped memory for tpu_custom_call.1']
    #allocation5 [shape = 'u8[65536]{0}', space=vmem, size = 0x10000, scoped, tag = 'input window, operand 3, single buffered']
    #allocation6 [shape = 's32[1]{0}', space=sflag, size = 0x4, scoped, tag = 'scoped memory for tpu_custom_call.1']
    #allocation7 [shape = 'u8[32768]{0}', space=vmem, size = 0x8000, scoped, tag = 'output window, operand 0']
    %10 = vsyncpa [#allocation3], 0
    %11 = vsyncpa [#allocation6], 0
    %12 = vsyncpa [#allocation4], 0
    %s13 = scalar_lea.sflag [#allocation4], 1
    %14 = vsyncpa %s13, 0
    loop: start=0, step=1, limit=4
    $region2: #{tpu_custom_call.1} parent=1 // loop_pre_header
      _
    $region3: #{tpu_custom_call.1} parent=1 // loop_header
      %s16 = sphi 0, %s20
      %p17 = scmp.ge.s32.totalorder %s16, 4
      %s26 = sphi 0, %s28
      %s29 = sphi 0, %s26
      %s30 = sphi 0, %s29
      %s46 = sphi 0, %s30
      %s50 = sphi 0, %s50
      %s52 = sphi 0, %s50
      %s53 = sphi 0, %s52
      %s67 = sphi 0, %s53
      %s71 = sphi 0, %s71
      %s73 = sphi 0, %s71
      %s74 = sphi 0, %s73
      %s88 = sphi 0, %s74
      %s92 = sphi 0, %s92
      %s94 = sphi 0, %s92
      %s95 = sphi 0, %s94
      %s109 = sphi 0, %s95
      %s113 = sphi 0, %s113
      %s115 = sphi 0, %s113
      %s116 = sphi 0, %s115
      %s130 = sphi 0, %s116
      %s136 = sphi 0, %s138
      %s139 = sphi 0, %s136
      %s140 = sphi 0, %s139
      %s156 = sphi 0, %s140
    $region4: #{tpu_custom_call.1} parent=1 // loop_header_branch
      %19 = sbr.rel (%p17) target = $region8
    $region5: #{tpu_custom_call.1} parent=1 // loop_body
      %s21 = ssub.s32 %s16, 1
      %s22 = ssub.s32 %s16, 2
      %s23 = sadd.s32 %s16, 1
      %s24 = ssub.s32 %s16, %s23
      %p25 = scmp.eq.s32.totalorder %s24, 0
      %s27 = sadd.s32 %s26, 1
      %s28 = scalar_select %p25, %s26, %s27
      %p31 = pneg %p25
      %p32 = scmp.eq.s32.totalorder %s16, 1
      %p33 = por %p31, %p32
      %p34 = scmp.ne.s32.totalorder %s26, %s29
      %p35 = scmp.eq.s32.totalorder %s16, 0
      %p36 = por %p34, %p35
      %p37 = scmp.ne.s32.totalorder %s26, %s29
      %p38 = scmp.eq.s32.totalorder %s21, 1
      %p39 = por %p37, %p38
      %p40 = scmp.ne.s32.totalorder %s29, %s30
      %p41 = scmp.eq.s32.totalorder %s21, 0
      %p42 = por %p40, %p41
      %p43 = scmp.ne.s32.totalorder %s29, %s30
      %p44 = scmp.eq.s32.totalorder %s22, 1
      %p45 = por %p43, %p44
      %p47 = scmp.ne.s32.totalorder %s30, %s46
      %p48 = scmp.eq.s32.totalorder %s22, 0
      %p49 = por %p47, %p48
      %s51 = sadd.s32 %s50, 1
      %p54 = scmp.eq.s32.totalorder %s16, 1
      %p55 = scmp.ne.s32.totalorder %s50, %s52
      %p56 = scmp.eq.s32.totalorder %s16, 0
      %p57 = por %p55, %p56
      %p58 = scmp.ne.s32.totalorder %s50, %s52
      %p59 = scmp.eq.s32.totalorder %s21, 1
      %p60 = por %p58, %p59
      %p61 = scmp.ne.s32.totalorder %s52, %s53
      %p62 = scmp.eq.s32.totalorder %s21, 0
      %p63 = por %p61, %p62
      %p64 = scmp.ne.s32.totalorder %s52, %s53
      %p65 = scmp.eq.s32.totalorder %s22, 1
      %p66 = por %p64, %p65
      %p68 = scmp.ne.s32.totalorder %s53, %s67
      %p69 = scmp.eq.s32.totalorder %s22, 0
      %p70 = por %p68, %p69
      %s72 = sadd.s32 %s71, 1
      %p75 = scmp.eq.s32.totalorder %s16, 1
      %p76 = scmp.ne.s32.totalorder %s71, %s73
      %p77 = scmp.eq.s32.totalorder %s16, 0
      %p78 = por %p76, %p77
      %p79 = scmp.ne.s32.totalorder %s71, %s73
      %p80 = scmp.eq.s32.totalorder %s21, 1
      %p81 = por %p79, %p80
      %p82 = scmp.ne.s32.totalorder %s73, %s74
      %p83 = scmp.eq.s32.totalorder %s21, 0
      %p84 = por %p82, %p83
      %p85 = scmp.ne.s32.totalorder %s73, %s74
      %p86 = scmp.eq.s32.totalorder %s22, 1
      %p87 = por %p85, %p86
      %p89 = scmp.ne.s32.totalorder %s74, %s88
      %p90 = scmp.eq.s32.totalorder %s22, 0
      %p91 = por %p89, %p90
      %s93 = sadd.s32 %s92, 1
      %p96 = scmp.eq.s32.totalorder %s16, 1
      %p97 = scmp.ne.s32.totalorder %s92, %s94
      %p98 = scmp.eq.s32.totalorder %s16, 0
      %p99 = por %p97, %p98
      %p100 = scmp.ne.s32.totalorder %s92, %s94
      %p101 = scmp.eq.s32.totalorder %s21, 1
      %p102 = por %p100, %p101
      %p103 = scmp.ne.s32.totalorder %s94, %s95
      %p104 = scmp.eq.s32.totalorder %s21, 0
      %p105 = por %p103, %p104
      %p106 = scmp.ne.s32.totalorder %s94, %s95
      %p107 = scmp.eq.s32.totalorder %s22, 1
      %p108 = por %p106, %p107
      %p110 = scmp.ne.s32.totalorder %s95, %s109
      %p111 = scmp.eq.s32.totalorder %s22, 0
      %p112 = por %p110, %p111
      %s114 = sadd.s32 %s113, 1
      %p117 = scmp.eq.s32.totalorder %s16, 1
      %p118 = scmp.ne.s32.totalorder %s113, %s115
      %p119 = scmp.eq.s32.totalorder %s16, 0
      %p120 = por %p118, %p119
      %p121 = scmp.ne.s32.totalorder %s113, %s115
      %p122 = scmp.eq.s32.totalorder %s21, 1
      %p123 = por %p121, %p122
      %p124 = scmp.ne.s32.totalorder %s115, %s116
      %p125 = scmp.eq.s32.totalorder %s21, 0
      %p126 = por %p124, %p125
      %p127 = scmp.ne.s32.totalorder %s115, %s116
      %p128 = scmp.eq.s32.totalorder %s22, 1
      %p129 = por %p127, %p128
      %p131 = scmp.ne.s32.totalorder %s116, %s130
      %p132 = scmp.eq.s32.totalorder %s22, 0
      %p133 = por %p131, %p132
      %s134 = ssub.s32 %s16, %s23
      %p135 = scmp.eq.s32.totalorder %s134, 0
      %s137 = sadd.s32 %s136, 1
      %s138 = scalar_select %p135, %s136, %s137
      %p141 = pneg %p135
      %p142 = scmp.eq.s32.totalorder %s16, 1
      %p143 = por %p141, %p142
      %p144 = scmp.ne.s32.totalorder %s136, %s139
      %p145 = scmp.eq.s32.totalorder %s16, 0
      %p146 = por %p144, %p145
      %p147 = scmp.ne.s32.totalorder %s136, %s139
      %p148 = scmp.eq.s32.totalorder %s21, 1
      %p149 = por %p147, %p148
      %p150 = scmp.ne.s32.totalorder %s139, %s140
      %p151 = scmp.eq.s32.totalorder %s21, 0
      %p152 = por %p150, %p151
      %p153 = scmp.ne.s32.totalorder %s139, %s140
      %p154 = scmp.eq.s32.totalorder %s22, 1
      %p155 = por %p153, %p154
      %p157 = scmp.ne.s32.totalorder %s140, %s156
      %p158 = scmp.eq.s32.totalorder %s22, 0
      %p159 = por %p157, %p158
      %p160 = scmp.le.s32.totalorder 1, %s16
      %p161 = scmp.lt.s32.totalorder %s16, 3
      %p162 = pnand %p160, %p161
      %p163 = pneg %p162
      // Predicated region
      $region9: #{tpu_custom_call.1} parent=5 // pred_check
        _
      $region10: #{tpu_custom_call.1} parent=5 // pred_check_branch
        %165 = sbr.rel (%p162) target = $region12
      $region11: #{tpu_custom_call.1} parent=5 // pred_region
        %s166 = ssub.s32 %s16, 1
        // Predicated region
        $region13: #{tpu_custom_call.1} parent=11 // pred_check
          %p167 = pneg %p63
        $region14: #{tpu_custom_call.1} parent=11 // pred_check_branch
          %169 = sbr.rel (%p167) target = $region16
        $region15: #{tpu_custom_call.1} parent=11 // pred_region
          _
        $region16: #{tpu_custom_call.1} parent=11 // pred_fallthru
          _
        // Predicated region
        $region17: #{tpu_custom_call.1} parent=11 // pred_check
          %p170 = pneg %p84
        $region18: #{tpu_custom_call.1} parent=11 // pred_check_branch
          %172 = sbr.rel (%p170) target = $region20
        $region19: #{tpu_custom_call.1} parent=11 // pred_region
          %s174 = ssub.s32 2048, 2048
          %175 = vsyncadd [#allocation3], %s174
          %s176 = sshll.u32 [#allocation2], 4
          %s177 = int_to_ptr.vmem [resolvable:$true] %s176
          %182 = dma.hbm_to_vmem [thread:$0]  %s2, 2048, %s177, [#allocation3], 128, 128, 8
        $region20: #{tpu_custom_call.1} parent=11 // pred_fallthru
          _
        // Predicated region
        $region21: #{tpu_custom_call.1} parent=11 // pred_check
          %p183 = pneg %p105
        $region22: #{tpu_custom_call.1} parent=11 // pred_check_branch
          %185 = sbr.rel (%p183) target = $region24
        $region23: #{tpu_custom_call.1} parent=11 // pred_region
          %s187 = ssub.s32 2048, 2048
          %188 = vsyncadd [#allocation6], %s187
          %s189 = sshll.u32 [#allocation5], 4
          %s190 = int_to_ptr.vmem [resolvable:$true] %s189
          %195 = dma.hbm_to_vmem [thread:$0]  %s3, 2048, %s190, [#allocation6], 128, 128, 8
        $region24: #{tpu_custom_call.1} parent=11 // pred_fallthru
          _
        // Predicated region
        $region25: #{tpu_custom_call.1} parent=11 // pred_check
          %p196 = pneg %p126
        $region26: #{tpu_custom_call.1} parent=11 // pred_check_branch
          %198 = sbr.rel (%p196) target = $region28
        $region27: #{tpu_custom_call.1} parent=11 // pred_region
          _
        $region28: #{tpu_custom_call.1} parent=11 // pred_fallthru
          _
      $region12: #{tpu_custom_call.1} parent=5 // pred_fallthru
        _
      %p199 = scmp.lt.s32.totalorder %s16, 2
      // Predicated region
      $region29: #{tpu_custom_call.1} parent=5 // pred_check
        %p200 = pneg %p199
      $region30: #{tpu_custom_call.1} parent=5 // pred_check_branch
        %202 = sbr.rel (%p200) target = $region32
      $region31: #{tpu_custom_call.1} parent=5 // pred_region
        // Predicated region
        $region33: #{tpu_custom_call.1} parent=31 // pred_check
          %p203 = pneg %p36
        $region34: #{tpu_custom_call.1} parent=31 // pred_check_branch
          %205 = sbr.rel (%p203) target = $region36
        $region35: #{tpu_custom_call.1} parent=31 // pred_region
          %s206 = smul.u32 4, %s16
          %p207 = scmp.lt.s32.totalorder %s206, 7
          %s208 = scalar_select %p207, %s206, 7
          %s209 = smul.addr %s208, 8
          %s210 = scalar_lea.vmem %s0, %s209
          %s211 = smul.u32 4, %s16
        $region36: #{tpu_custom_call.1} parent=31 // pred_fallthru
          _
      $region32: #{tpu_custom_call.1} parent=5 // pred_fallthru
        _
      %p212 = scmp.le.s32.totalorder 1, %s16
      %p213 = scmp.lt.s32.totalorder %s16, 3
      %p214 = pnand %p212, %p213
      %p215 = pneg %p214
      // Predicated region
      $region37: #{tpu_custom_call.1} parent=5 // pred_check
        _
      $region38: #{tpu_custom_call.1} parent=5 // pred_check_branch
        %217 = sbr.rel (%p214) target = $region40
      $region39: #{tpu_custom_call.1} parent=5 // pred_region
        %s218 = ssub.s32 %s16, 1
        // Predicated region
        $region41: #{tpu_custom_call.1} parent=39 // pred_check
          %p219 = pneg %p84
        $region42: #{tpu_custom_call.1} parent=39 // pred_check_branch
          %221 = sbr.rel (%p219) target = $region44
        $region43: #{tpu_custom_call.1} parent=39 // pred_region
          %222 = dma.done [#allocation3], 2048
        $region44: #{tpu_custom_call.1} parent=39 // pred_fallthru
          _
        // Predicated region
        $region45: #{tpu_custom_call.1} parent=39 // pred_check
          %p223 = pneg %p105
        $region46: #{tpu_custom_call.1} parent=39 // pred_check_branch
          %225 = sbr.rel (%p223) target = $region48
        $region47: #{tpu_custom_call.1} parent=39 // pred_region
          %226 = dma.done [#allocation6], 2048
        $region48: #{tpu_custom_call.1} parent=39 // pred_fallthru
          _
        %s227 = smul.u32 4, %s21
        %p228 = scmp.lt.s32.totalorder %s227, 7
        %s229 = scalar_select %p228, %s227, 7
        %s230 = smul.addr %s229, 8
        %s231 = scalar_lea.vmem %s0, %s230
        %p232 = pneg %p42
        %p233 = pneg %p39
        %p234 = pneg %p63
        %p235 = pneg %p60
        %p236 = pneg %p84
        %p237 = pneg %p81
        %p238 = pneg %p105
        %p239 = pneg %p102
        %p240 = pneg %p126
        %p241 = pneg %p123
        %p242 = pneg %p152
        %p243 = pneg %p149
        %s244 = sand.u32 %s139, 1
        %s245 = scalar_lea.sflag [#allocation4], %s244
        %s246 = sand.u32 %s139, 1
        %s247 = smul.addr %s246, 32
        %s248 = scalar_lea.vmem [#allocation7], %s247
        %s249 = smul.u32 4, %s21
        %p250 = scmp.lt.s32.totalorder %s249, 7
        %s251 = scalar_select %p250, %s249, 7
        %s252 = smul.addr %s251, 8
        %s253 = scalar_lea.vmem %s0, %s252
        %s254 = smul.u32 4, %s21
        %s255 = smul.u32 4, %s21
        %v256 = vld [vmem:[%s253] sm:$0xff]
        %v257 = vld [vmem:[%s253 + $0x8] sm:$0xff]
        %v258 = vld [vmem:[%s253 + $0x10] sm:$0xff]
        %v259 = vld [vmem:[%s253 + $0x18] sm:$0xff]
        %v260 = vld [vmem:[%s4] sm:$0x1f]
        %v261 = vld [vmem:[%s1] sm:$0xff]
        %v262 = vld [vmem:[%s1 + $0x8] sm:$0xff]
        %v263 = vlaneseq
        %v264 = vshrl.u32 %v263, 7
        %v265 = vsub.s32 0, %v264
        %v266 = vrot.slane %v260, %v265
        %vm267 = vcmask 130048
        %v269 = vsel %vm267, %v256, 0
        %v272 = vsel %vm267, %v257, 0
        %v275 = vsel %vm267, %v258, 0
        %v278 = vsel %vm267, %v259, 0
        %280 = vmatprep.subr.mxu0 0.0
        %281 = vmatpush1.msra.mxu0 0.0
        %282 = vmatprep.subr.mxu0 0.0
        %283 = vmatpush1.msra.mxu0 0.0
        %284 = vmatprep.subr.mxu0 0.0
        %285 = vmatpush1.msra.mxu0 0.0
        %286 = vmatprep.subr.mxu0 0.0
        %287 = vmatpush1.msra.mxu0 0.0
        %288 = vmatprep.subr.mxu0 0.0
        %289 = vmatpush1.msra.mxu0 0.0
        %290 = vmatprep.subr.mxu0 0.0
        %291 = vmatpush1.msra.mxu0 0.0
        %292 = vmatprep.subr.mxu0 0.0
        %293 = vmatpush1.msra.mxu0 0.0
        %294 = vmatprep.subr.mxu0 0.0
        %295 = vmatpush1.msra.mxu0 0.0
        %296 = vmatprep.subr.mxu0 0.0
        %297 = vmatpush1.msra.mxu0 0.0
        %298 = vmatprep.subr.mxu0 0.0
        %299 = vmatpush1.msra.mxu0 0.0
        %300 = vmatprep.subr.mxu0 0.0
        %301 = vmatpush1.msra.mxu0 0.0
        %302 = vmatprep.subr.mxu0 0.0
        %303 = vmatpush1.msra.mxu0 0.0
        %304 = vmatprep.subr.mxu0 0.0
        %305 = vmatpush1.msra.mxu0 0.0
        %306 = vmatprep.subr.mxu0 0.0
        %307 = vmatpush1.msra.mxu0 0.0
        %308 = vmatprep.subr.mxu0 0.0
        %309 = vmatpush1.msra.mxu0 %v262
        %310 = vmatprep.subr.mxu0 0.0
        %311 = vmatpush1.msra.mxu0 %v261
        %312 = vmatprep.subr.mxu0 0.0
        %313 = vmatpush2.msra.mxu0 0.0
        %314 = vmatprep.subr.mxu0 0.0
        %315 = vmatpush2.msra.mxu0 0.0
        %316 = vmatprep.subr.mxu0 0.0
        %317 = vmatpush2.msra.mxu0 0.0
        %318 = vmatprep.subr.mxu0 0.0
        %319 = vmatpush2.msra.mxu0 0.0
        %320 = vmatprep.subr.mxu0 0.0
        %321 = vmatpush2.msra.mxu0 0.0
        %322 = vmatprep.subr.mxu0 0.0
        %323 = vmatpush2.msra.mxu0 0.0
        %324 = vmatprep.subr.mxu0 0.0
        %325 = vmatpush2.msra.mxu0 0.0
        %326 = vmatprep.subr.mxu0 0.0
        %327 = vmatpush2.msra.mxu0 0.0
        %328 = vmatprep.subr.mxu0 0.0
        %329 = vmatpush2.msra.mxu0 0.0
        %330 = vmatprep.subr.mxu0 0.0
        %331 = vmatpush2.msra.mxu0 0.0
        %332 = vmatprep.subr.mxu0 0.0
        %333 = vmatpush2.msra.mxu0 0.0
        %334 = vmatprep.subr.mxu0 0.0
        %335 = vmatpush2.msra.mxu0 0.0
        %336 = vmatprep.subr.mxu0 0.0
        %337 = vmatpush2.msra.mxu0 0.0
        %338 = vmatprep.subr.mxu0 0.0
        %339 = vmatpush2.msra.mxu0 0.0
        %340 = vmatprep.subr.mxu0 0.0
        %341 = vmatpush2.msra.mxu0 0.0
        %342 = vmatprep.subr.mxu0 0.0
        %343 = vmatpush2.msra.mxu0 0.0
        %344 = vmatprep.mubr.f32.mxu0 0.0
        %345 = vmatmul.mubr.f32.gmra.mxu0 %v269
        %v346 = vpop.f32.mrf.mxu0
        %v347 = vadd.f32 %v266, %v346
        %v348 = vpop.f32.mrf.mxu0
        %349 = vmatprep.mubr.f32.mxu0 0.0
        %350 = vmatmul.mubr.f32.gmra.mxu0 %v272
        %v351 = vpop.f32.mrf.mxu0
        %v352 = vadd.f32 %v266, %v351
        %v353 = vpop.f32.mrf.mxu0
        %354 = vmatprep.mubr.f32.mxu0 0.0
        %355 = vmatmul.mubr.f32.gmra.mxu0 %v275
        %v356 = vpop.f32.mrf.mxu0
        %v357 = vadd.f32 %v266, %v356
        %v358 = vpop.f32.mrf.mxu0
        %359 = vmatprep.mubr.f32.mxu0 0.0
        %360 = vmatmul.mubr.f32.gmra.mxu0 %v278
        %v361 = vpop.f32.mrf.mxu0
        %v362 = vadd.f32 %v266, %v361
        %v363 = vpop.f32.mrf.mxu0
        %364 = vdwg.mxu0
        %v365 = vmax.f32 %v347, 0.0
        %v366 = vmax.f32 %v352, 0.0
        %v367 = vmax.f32 %v357, 0.0
        %v368 = vmax.f32 %v362, 0.0
        %v369 = vld [vmem:[#allocation2] sm:$0xff]
        %v370 = vld [vmem:[#allocation2 + $0x8] sm:$0xff]
        %v371 = vld [vmem:[#allocation2 + $0x10] sm:$0xff]
        %v372 = vld [vmem:[#allocation2 + $0x18] sm:$0xff]
        %v373 = vld [vmem:[#allocation2 + $0x20] sm:$0xff]
        %v374 = vld [vmem:[#allocation2 + $0x28] sm:$0xff]
        %v375 = vld [vmem:[#allocation2 + $0x30] sm:$0xff]
        %v376 = vld [vmem:[#allocation2 + $0x38] sm:$0xff]
        %v377 = vld [vmem:[#allocation2 + $0x40] sm:$0xff]
        %v378 = vld [vmem:[#allocation2 + $0x48] sm:$0xff]
        %v379 = vld [vmem:[#allocation2 + $0x50] sm:$0xff]
        %v380 = vld [vmem:[#allocation2 + $0x58] sm:$0xff]
        %v381 = vld [vmem:[#allocation2 + $0x60] sm:$0xff]
        %v382 = vld [vmem:[#allocation2 + $0x68] sm:$0xff]
        %v383 = vld [vmem:[#allocation2 + $0x70] sm:$0xff]
        %v384 = vld [vmem:[#allocation2 + $0x78] sm:$0xff]
        %v385 = vlaneseq
        %v386 = vshrl.u32 %v385, 7
        %v387 = vsub.s32 1, %v386
        %v388 = vrot.slane %v260, %v387
        %389 = vmatprep.subr.mxu0 0.0
        %390 = vmatpush1.msra.mxu0 %v384
        %391 = vmatprep.subr.mxu0 0.0
        %392 = vmatpush1.msra.mxu0 %v383
        %393 = vmatprep.subr.mxu0 0.0
        %394 = vmatpush1.msra.mxu0 %v382
        %395 = vmatprep.subr.mxu0 0.0
        %396 = vmatpush1.msra.mxu0 %v381
        %397 = vmatprep.subr.mxu0 0.0
        %398 = vmatpush1.msra.mxu0 %v380
        %399 = vmatprep.subr.mxu0 0.0
        %400 = vmatpush1.msra.mxu0 %v379
        %401 = vmatprep.subr.mxu0 0.0
        %402 = vmatpush1.msra.mxu0 %v378
        %403 = vmatprep.subr.mxu0 0.0
        %404 = vmatpush1.msra.mxu0 %v377
        %405 = vmatprep.subr.mxu0 0.0
        %406 = vmatpush1.msra.mxu0 %v376
        %407 = vmatprep.subr.mxu0 0.0
        %408 = vmatpush1.msra.mxu0 %v375
        %409 = vmatprep.subr.mxu0 0.0
        %410 = vmatpush1.msra.mxu0 %v374
        %411 = vmatprep.subr.mxu0 0.0
        %412 = vmatpush1.msra.mxu0 %v373
        %413 = vmatprep.subr.mxu0 0.0
        %414 = vmatpush1.msra.mxu0 %v372
        %415 = vmatprep.subr.mxu0 0.0
        %416 = vmatpush1.msra.mxu0 %v371
        %417 = vmatprep.subr.mxu0 0.0
        %418 = vmatpush1.msra.mxu0 %v370
        %419 = vmatprep.subr.mxu0 0.0
        %420 = vmatpush1.msra.mxu0 %v369
        %421 = vmatprep.subr.mxu0 0.0
        %422 = vmatpush2.msra.mxu0 0.0
        %423 = vmatprep.subr.mxu0 0.0
        %424 = vmatpush2.msra.mxu0 0.0
        %425 = vmatprep.subr.mxu0 0.0
        %426 = vmatpush2.msra.mxu0 0.0
        %427 = vmatprep.subr.mxu0 0.0
        %428 = vmatpush2.msra.mxu0 0.0
        %429 = vmatprep.subr.mxu0 0.0
        %430 = vmatpush2.msra.mxu0 0.0
        %431 = vmatprep.subr.mxu0 0.0
        %432 = vmatpush2.msra.mxu0 0.0
        %433 = vmatprep.subr.mxu0 0.0
        %434 = vmatpush2.msra.mxu0 0.0
        %435 = vmatprep.subr.mxu0 0.0
        %436 = vmatpush2.msra.mxu0 0.0
        %437 = vmatprep.subr.mxu0 0.0
        %438 = vmatpush2.msra.mxu0 0.0
        %439 = vmatprep.subr.mxu0 0.0
        %440 = vmatpush2.msra.mxu0 0.0
        %441 = vmatprep.subr.mxu0 0.0
        %442 = vmatpush2.msra.mxu0 0.0
        %443 = vmatprep.subr.mxu0 0.0
        %444 = vmatpush2.msra.mxu0 0.0
        %445 = vmatprep.subr.mxu0 0.0
        %446 = vmatpush2.msra.mxu0 0.0
        %447 = vmatprep.subr.mxu0 0.0
        %448 = vmatpush2.msra.mxu0 0.0
        %449 = vmatprep.subr.mxu0 0.0
        %450 = vmatpush2.msra.mxu0 0.0
        %451 = vmatprep.subr.mxu0 0.0
        %452 = vmatpush2.msra.mxu0 0.0
        %453 = vmatprep.mubr.f32.mxu0 0.0
        %454 = vmatmul.mubr.f32.gmra.mxu0 %v365
        %v455 = vpop.f32.mrf.mxu0
        %v456 = vadd.f32 %v388, %v455
        %v457 = vpop.f32.mrf.mxu0
        %458 = vmatprep.mubr.f32.mxu0 0.0
        %459 = vmatmul.mubr.f32.gmra.mxu0 %v366
        %v460 = vpop.f32.mrf.mxu0
        %v461 = vadd.f32 %v388, %v460
        %v462 = vpop.f32.mrf.mxu0
        %463 = vmatprep.mubr.f32.mxu0 0.0
        %464 = vmatmul.mubr.f32.gmra.mxu0 %v367
        %v465 = vpop.f32.mrf.mxu0
        %v466 = vadd.f32 %v388, %v465
        %v467 = vpop.f32.mrf.mxu0
        %468 = vmatprep.mubr.f32.mxu0 0.0
        %469 = vmatmul.mubr.f32.gmra.mxu0 %v368
        %v470 = vpop.f32.mrf.mxu0
        %v471 = vadd.f32 %v388, %v470
        %v472 = vpop.f32.mrf.mxu0
        %473 = vdwg.mxu0
        %v474 = vmax.f32 %v456, 0.0
        %v475 = vmax.f32 %v461, 0.0
        %v476 = vmax.f32 %v466, 0.0
        %v477 = vmax.f32 %v471, 0.0
        %v478 = vld [vmem:[#allocation5] sm:$0xff]
        %v479 = vld [vmem:[#allocation5 + $0x8] sm:$0xff]
        %v480 = vld [vmem:[#allocation5 + $0x10] sm:$0xff]
        %v481 = vld [vmem:[#allocation5 + $0x18] sm:$0xff]
        %v482 = vld [vmem:[#allocation5 + $0x20] sm:$0xff]
        %v483 = vld [vmem:[#allocation5 + $0x28] sm:$0xff]
        %v484 = vld [vmem:[#allocation5 + $0x30] sm:$0xff]
        %v485 = vld [vmem:[#allocation5 + $0x38] sm:$0xff]
        %v486 = vld [vmem:[#allocation5 + $0x40] sm:$0xff]
        %v487 = vld [vmem:[#allocation5 + $0x48] sm:$0xff]
        %v488 = vld [vmem:[#allocation5 + $0x50] sm:$0xff]
        %v489 = vld [vmem:[#allocation5 + $0x58] sm:$0xff]
        %v490 = vld [vmem:[#allocation5 + $0x60] sm:$0xff]
        %v491 = vld [vmem:[#allocation5 + $0x68] sm:$0xff]
        %v492 = vld [vmem:[#allocation5 + $0x70] sm:$0xff]
        %v493 = vld [vmem:[#allocation5 + $0x78] sm:$0xff]
        %v494 = vlaneseq
        %v495 = vshrl.u32 %v494, 7
        %v496 = vsub.s32 2, %v495
        %v497 = vrot.slane %v260, %v496
        %498 = vmatprep.subr.mxu0 0.0
        %499 = vmatpush1.msra.mxu0 %v493
        %500 = vmatprep.subr.mxu0 0.0
        %501 = vmatpush1.msra.mxu0 %v492
        %502 = vmatprep.subr.mxu0 0.0
        %503 = vmatpush1.msra.mxu0 %v491
        %504 = vmatprep.subr.mxu0 0.0
        %505 = vmatpush1.msra.mxu0 %v490
        %506 = vmatprep.subr.mxu0 0.0
        %507 = vmatpush1.msra.mxu0 %v489
        %508 = vmatprep.subr.mxu0 0.0
        %509 = vmatpush1.msra.mxu0 %v488
        %510 = vmatprep.subr.mxu0 0.0
        %511 = vmatpush1.msra.mxu0 %v487
        %512 = vmatprep.subr.mxu0 0.0
        %513 = vmatpush1.msra.mxu0 %v486
        %514 = vmatprep.subr.mxu0 0.0
        %515 = vmatpush1.msra.mxu0 %v485
        %516 = vmatprep.subr.mxu0 0.0
        %517 = vmatpush1.msra.mxu0 %v484
        %518 = vmatprep.subr.mxu0 0.0
        %519 = vmatpush1.msra.mxu0 %v483
        %520 = vmatprep.subr.mxu0 0.0
        %521 = vmatpush1.msra.mxu0 %v482
        %522 = vmatprep.subr.mxu0 0.0
        %523 = vmatpush1.msra.mxu0 %v481
        %524 = vmatprep.subr.mxu0 0.0
        %525 = vmatpush1.msra.mxu0 %v480
        %526 = vmatprep.subr.mxu0 0.0
        %527 = vmatpush1.msra.mxu0 %v479
        %528 = vmatprep.subr.mxu0 0.0
        %529 = vmatpush1.msra.mxu0 %v478
        %530 = vmatprep.subr.mxu0 0.0
        %531 = vmatpush2.msra.mxu0 0.0
        %532 = vmatprep.subr.mxu0 0.0
        %533 = vmatpush2.msra.mxu0 0.0
        %534 = vmatprep.subr.mxu0 0.0
        %535 = vmatpush2.msra.mxu0 0.0
        %536 = vmatprep.subr.mxu0 0.0
        %537 = vmatpush2.msra.mxu0 0.0
        %538 = vmatprep.subr.mxu0 0.0
        %539 = vmatpush2.msra.mxu0 0.0
        %540 = vmatprep.subr.mxu0 0.0
        %541 = vmatpush2.msra.mxu0 0.0
        %542 = vmatprep.subr.mxu0 0.0
        %543 = vmatpush2.msra.mxu0 0.0
        %544 = vmatprep.subr.mxu0 0.0
        %545 = vmatpush2.msra.mxu0 0.0
        %546 = vmatprep.subr.mxu0 0.0
        %547 = vmatpush2.msra.mxu0 0.0
        %548 = vmatprep.subr.mxu0 0.0
        %549 = vmatpush2.msra.mxu0 0.0
        %550 = vmatprep.subr.mxu0 0.0
        %551 = vmatpush2.msra.mxu0 0.0
        %552 = vmatprep.subr.mxu0 0.0
        %553 = vmatpush2.msra.mxu0 0.0
        %554 = vmatprep.subr.mxu0 0.0
        %555 = vmatpush2.msra.mxu0 0.0
        %556 = vmatprep.subr.mxu0 0.0
        %557 = vmatpush2.msra.mxu0 0.0
        %558 = vmatprep.subr.mxu0 0.0
        %559 = vmatpush2.msra.mxu0 0.0
        %560 = vmatprep.subr.mxu0 0.0
        %561 = vmatpush2.msra.mxu0 0.0
        %562 = vmatprep.mubr.f32.mxu0 0.0
        %563 = vmatmul.mubr.f32.gmra.mxu0 %v474
        %v564 = vpop.f32.mrf.mxu0
        %v565 = vadd.f32 %v497, %v564
        %v566 = vpop.f32.mrf.mxu0
        %567 = vmatprep.mubr.f32.mxu0 0.0
        %568 = vmatmul.mubr.f32.gmra.mxu0 %v475
        %v569 = vpop.f32.mrf.mxu0
        %v570 = vadd.f32 %v497, %v569
        %v571 = vpop.f32.mrf.mxu0
        %572 = vmatprep.mubr.f32.mxu0 0.0
        %573 = vmatmul.mubr.f32.gmra.mxu0 %v476
        %v574 = vpop.f32.mrf.mxu0
        %v575 = vadd.f32 %v497, %v574
        %v576 = vpop.f32.mrf.mxu0
        %577 = vmatprep.mubr.f32.mxu0 0.0
        %578 = vmatmul.mubr.f32.gmra.mxu0 %v477
        %v579 = vpop.f32.mrf.mxu0
        %v580 = vadd.f32 %v497, %v579
        %v581 = vpop.f32.mrf.mxu0
        %582 = vdwg.mxu0
        %v583 = vlaneseq
        %v584 = vshrl.u32 %v583, 7
        %v585 = vsub.s32 3, %v584
        %v586 = vrot.slane %v260, %v585
        %v587 = vmax.f32 %v565, %v586
        %v588 = vmax.f32 %v570, %v586
        %v589 = vmax.f32 %v575, %v586
        %v590 = vmax.f32 %v580, %v586
        %v591 = vlaneseq
        %v592 = vshrl.u32 %v591, 7
        %v593 = vsub.s32 4, %v592
        %v594 = vrot.slane %v260, %v593
        %v595 = vmin.f32 %v587, %v594
        %v596 = vmin.f32 %v588, %v594
        %v597 = vmin.f32 %v589, %v594
        %v598 = vmin.f32 %v590, %v594
        %599 = vst [vmem:[%s248] sm:$0xff] %v595
        %600 = vst [vmem:[%s248 + $0x8] sm:$0xff] %v596
        %601 = vst [vmem:[%s248 + $0x10] sm:$0xff] %v597
        %602 = vst [vmem:[%s248 + $0x18] sm:$0xff] %v598
        %s603 = sand.u32 %s139, 1
        %s604 = scalar_lea.sflag [#allocation4], %s603
        %s605 = sand.u32 %s139, 1
        %s606 = smul.addr %s605, 32
        %s607 = scalar_lea.vmem [#allocation7], %s606
        // Predicated region
        $region49: #{tpu_custom_call.1} parent=39 // pred_check
          %p608 = pneg %p149
        $region50: #{tpu_custom_call.1} parent=39 // pred_check_branch
          %610 = sbr.rel (%p608) target = $region52
        $region51: #{tpu_custom_call.1} parent=39 // pred_region
          %s611 = smul.u32 4, %s21
          %s613 = ssub.s32 512, 512
          %614 = vsyncadd %s604, %s613
          %s615 = smul.addr %s611, 128
          %s616 = scalar_lea.hbm %s5, %s615
          %s617 = sshll.u32 %s607, 4
          %s618 = int_to_ptr.vmem [resolvable:$true] %s617
          %623 = dma.vmem_to_hbm [thread:$0]  %s618, 512, %s616, %s604, 128, 128, 8
        $region52: #{tpu_custom_call.1} parent=39 // pred_fallthru
          _
      $region40: #{tpu_custom_call.1} parent=5 // pred_fallthru
        _
      %p624 = scmp.le.s32.totalorder 2, %s16
      // Predicated region
      $region53: #{tpu_custom_call.1} parent=5 // pred_check
        %p625 = pneg %p624
      $region54: #{tpu_custom_call.1} parent=5 // pred_check_branch
        %627 = sbr.rel (%p625) target = $region56
      $region55: #{tpu_custom_call.1} parent=5 // pred_region
        %s628 = ssub.s32 %s16, 2
        // Predicated region
        $region57: #{tpu_custom_call.1} parent=55 // pred_check
          %p629 = pneg %p155
        $region58: #{tpu_custom_call.1} parent=55 // pred_check_branch
          %631 = sbr.rel (%p629) target = $region60
        $region59: #{tpu_custom_call.1} parent=55 // pred_region
          %s632 = sand.u32 %s140, 1
          %s633 = scalar_lea.sflag [#allocation4], %s632
          %s634 = sand.u32 %s140, 1
          %s635 = smul.addr %s634, 32
          %s636 = scalar_lea.vmem [#allocation7], %s635
          %637 = dma.done %s633, 512
        $region60: #{tpu_custom_call.1} parent=55 // pred_fallthru
          _
      $region56: #{tpu_custom_call.1} parent=5 // pred_fallthru
        _
    $region6: #{tpu_custom_call.1} parent=1 // loop_footer
      %s20 = sadd.s32 1, %s16
    $region7: #{tpu_custom_call.1} parent=1 // loop_footer_branch
      %15 = sbr.rel target = $region3
    $region8: #{tpu_custom_call.1} parent=1 // loop_exit
      _
    %638 = vsyncpa [#allocation3], 1
    %s639 = scalar_lea.sflag [#allocation3], 1
    %640 = vsyncpa %s639, 1
    %641 = vsyncpa [#allocation6], 1
    %642 = vsyncpa [#allocation4], 1
    %s643 = scalar_lea.sflag [#allocation4], 1
    %644 = vsyncpa %s643, 1

</llo_original>
